<compile_context>
chip_gen: v7x
topology: tpu7x:2x2x1
jax: 0.10.0
libtpu: 0.0.40
codegen_flags: <defaults>
</compile_context>

<pallas_src>
import functools

import jax
import jax.numpy as jnp
from jax import lax
from jax.experimental import pallas as pl
from jax.experimental.pallas import tpu as pltpu


def _round_up(n: int, m: int) -> int:
    return ((n + m - 1) // m) * m


def _pv_kernel(x_ref, w1_ref, w2_ref, wh_ref, b_ref, out_ref, *, value_col):
    h1_dim = w1_ref.shape[1]          # 256
    h2_dim = w2_ref.shape[1]          # 128

    x = x_ref[...]                    # (TB, K_pad) bf16

    # representation: Linear -> ReLU -> Linear -> ReLU (f32 accumulation / elementwise)
    h1 = jnp.dot(x, w1_ref[...], preferred_element_type=jnp.float32)
    h1 = jnp.maximum(h1 + b_ref[:, 0:h1_dim], 0.0)
    h1 = h1.astype(x.dtype)

    feat = jnp.dot(h1, w2_ref[...], preferred_element_type=jnp.float32)
    feat = jnp.maximum(feat + b_ref[:, h1_dim:h1_dim + h2_dim], 0.0)
    feat = feat.astype(x.dtype)

    # fused policy|value head -> lane-dense (TB, 128) slab
    heads = jnp.dot(feat, wh_ref[...], preferred_element_type=jnp.float32)
    heads = heads + b_ref[:, h1_dim + h2_dim:]

    # tanh only matters for the single value column; select keeps it on VPU/EUP.
    col = lax.broadcasted_iota(jnp.int32, heads.shape, 1)
    out = jnp.where(col == value_col, jnp.tanh(heads), heads)
    out_ref[...] = out.astype(out_ref.dtype)


def pack_params(params, *, compute_dtype=jnp.bfloat16):
    """Pad / fuse / cast the nn.Linear-style params once, outside the kernel."""
    w1, b1 = params["w1"], params["b1"]          # (obs, 256), (1, 256)
    w2, b2 = params["w2"], params["b2"]          # (256, 128), (1, 128)
    wp, bp = params["wp"], params["bp"]          # (128, A),   (1, A)
    wv, bv = params["wv"], params["bv"]          # (128, 1),   (1, 1)

    obs_dim, h1_dim = w1.shape
    h2_dim = w2.shape[1]
    num_actions = wp.shape[1]

    k_pad = _round_up(obs_dim, 128)                   # 214 -> 256
    head_pad = _round_up(num_actions + 1, 128)        # 41+1 -> 128

    w1_p = jnp.zeros((k_pad, h1_dim), compute_dtype).at[:obs_dim].set(
        w1.astype(compute_dtype))
    w2_p = w2.astype(compute_dtype)

    wh = jnp.zeros((h2_dim, head_pad), compute_dtype)
    wh = wh.at[:, :num_actions].set(wp.astype(compute_dtype))
    wh = wh.at[:, num_actions].set(wv[:, 0].astype(compute_dtype))

    bh = jnp.zeros((head_pad,), jnp.float32)
    bh = bh.at[:num_actions].set(bp[0].astype(jnp.float32))
    bh = bh.at[num_actions].set(bv[0, 0].astype(jnp.float32))
    b_all = jnp.concatenate(
        [b1[0].astype(jnp.float32), b2[0].astype(jnp.float32), bh])[None, :]

    return dict(w1=w1_p, w2=w2_p, wh=wh, b=b_all,
                obs_dim=obs_dim, num_actions=num_actions,
                k_pad=k_pad, head_pad=head_pad, compute_dtype=compute_dtype)


def alphazero_policy_value(x, packed, *, block_batch=256):
    """x: (batch, obs_dim) f32.  Returns (policy_logits (B, A), value (B, 1)), f32."""
    batch, obs_dim = x.shape
    assert obs_dim == packed["obs_dim"]
    num_actions = packed["num_actions"]
    k_pad, head_pad = packed["k_pad"], packed["head_pad"]
    cdt = packed["compute_dtype"]
    h1_dim = packed["w1"].shape[1]
    h2_dim = packed["w2"].shape[1]

    tb = min(block_batch, _round_up(batch, 8))
    b_pad = _round_up(batch, tb)
    grid = (b_pad // tb,)

    # zero-pad batch rows and obs columns; cast matmul operand to bf16
    x_p = jnp.zeros((b_pad, k_pad), cdt).at[:batch, :obs_dim].set(x.astype(cdt))

    kernel = functools.partial(_pv_kernel, value_col=num_actions)

    itemsize = jnp.dtype(cdt).itemsize
    flops = 2 * b_pad * (k_pad * h1_dim + h1_dim * h2_dim + h2_dim * head_pad)
    bytes_accessed = (
        b_pad * k_pad * itemsize                      # x in
        + (k_pad * h1_dim + h1_dim * h2_dim + h2_dim * head_pad) * itemsize
        + (h1_dim + h2_dim + head_pad) * 4            # biases
        + b_pad * head_pad * 4)                       # out
    cost = pl.CostEstimate(flops=flops,
                           transcendentals=b_pad * head_pad,
                           bytes_accessed=bytes_accessed)

    out = pl.pallas_call(
        kernel,
        out_shape=jax.ShapeDtypeStruct((b_pad, head_pad), jnp.float32),
        grid=grid,
        in_specs=[
            pl.BlockSpec((tb, k_pad), lambda i: (i, 0)),            # x: streamed per tile
            pl.BlockSpec((k_pad, h1_dim), lambda i: (0, 0)),        # weights: VMEM-resident
            pl.BlockSpec((h1_dim, h2_dim), lambda i: (0, 0)),
            pl.BlockSpec((h2_dim, head_pad), lambda i: (0, 0)),
            pl.BlockSpec((1, h1_dim + h2_dim + head_pad), lambda i: (0, 0)),  # packed biases
        ],
        out_specs=pl.BlockSpec((tb, head_pad), lambda i: (i, 0)),
        compiler_params=pltpu.CompilerParams(
            dimension_semantics=("parallel",),   # v7x: shard batch tiles across 2 TCs
            vmem_limit_bytes=8 << 20,
        ),
        cost_estimate=cost,
    )(x_p, packed["w1"], packed["w2"], packed["wh"], packed["b"])

    policy_logits = out[:batch, :num_actions]
    value = out[:batch, num_actions:num_actions + 1]
    return policy_logits, value


def init_params(key, obs_dim=214, num_actions=41):
    """Deterministic synthetic params, shapes matching nn.Linear layers (transposed)."""
    ks = jax.random.split(key, 8)

    def lin(kw, kb, fan_in, fan_out):
        bound = 1.0 / jnp.sqrt(fan_in)
        w = jax.random.uniform(kw, (fan_in, fan_out), jnp.float32, -bound, bound)
        b = jax.random.uniform(kb, (1, fan_out), jnp.float32, -bound, bound)
        return w, b

    w1, b1 = lin(ks[0], ks[1], obs_dim, 256)
    w2, b2 = lin(ks[2], ks[3], 256, 128)
    wp, bp = lin(ks[4], ks[5], 128, num_actions)
    wv, bv = lin(ks[6], ks[7], 128, 1)
    return dict(w1=w1, b1=b1, w2=w2, b2=b2, wp=wp, bp=bp, wv=wv, bv=bv)


def _reference(x, packed):
    """Pure-JAX reference using the SAME padded / bf16-cast params as the kernel."""
    f32 = jnp.float32
    cdt = packed["compute_dtype"]
    num_actions = packed["num_actions"]
    h1_dim = packed["w1"].shape[1]
    h2_dim = packed["w2"].shape[1]

    w1 = packed["w1"].astype(f32)[: x.shape[1]]
    w2 = packed["w2"].astype(f32)
    wh = packed["wh"].astype(f32)
    b = packed["b"][0]
    b1, b2, bh = b[:h1_dim], b[h1_dim:h1_dim + h2_dim], b[h1_dim + h2_dim:]

    xb = x.astype(cdt).astype(f32)
    h1 = jnp.maximum(xb @ w1 + b1, 0.0).astype(cdt).astype(f32)
    feat = jnp.maximum(h1 @ w2 + b2, 0.0).astype(cdt).astype(f32)
    heads = feat @ wh + bh
    return heads[:, :num_actions], jnp.tanh(heads[:, num_actions:num_actions + 1])


if __name__ == "__main__":
    key = jax.random.PRNGKey(0)
    kx, kp = jax.random.split(key)

    obs_dim, num_actions = 214, 41
    params = init_params(kp, obs_dim, num_actions)
    packed = pack_params(params)

    for batch in (8, 3):   # also exercises the batch-padding path
        x = jax.random.normal(kx, (batch, obs_dim), jnp.float32)

        policy_logits, value = alphazero_policy_value(x, packed)
        jax.block_until_ready((policy_logits, value))

        ref_p, ref_v = _reference(x, packed)
        assert policy_logits.shape == (batch, num_actions)
        assert value.shape == (batch, 1)
        assert jnp.allclose(policy_logits, ref_p, atol=2e-3, rtol=2e-3)
        assert jnp.allclose(value, ref_v, atol=2e-3, rtol=2e-3)

    print("KERNEL_OK")
</pallas_src>

<mosaic_0001>
module attributes {stable_mosaic.version = 11 : i64} {
  func.func @_pv_kernel(%arg0: i32, %arg1: memref<8x256xbf16, #tpu.memory_space<vmem>>, %arg2: memref<256x256xbf16, #tpu.memory_space<vmem>>, %arg3: memref<256x128xbf16, #tpu.memory_space<vmem>>, %arg4: memref<128x128xbf16, #tpu.memory_space<vmem>>, %arg5: memref<1x512xf32, #tpu.memory_space<vmem>>, %arg6: memref<8x128xf32, #tpu.memory_space<vmem>>) attributes {dimension_semantics = [#tpu.dimension_semantics<parallel>], iteration_bounds = array<i64: 1>, scalar_prefetch = 0 : i64, scratch_operands = 0 : i64, tpu.core_type = #tpu.core_type<tc>, window_params = [{transform_indices = @transform_0, window_bounds = array<i64: 8, 256>}, {pipeline_mode = #tpu.pipeline_mode<synchronous>, transform_indices = @transform_1, window_bounds = array<i64: 256, 256>}, {pipeline_mode = #tpu.pipeline_mode<synchronous>, transform_indices = @transform_2, window_bounds = array<i64: 256, 128>}, {pipeline_mode = #tpu.pipeline_mode<synchronous>, transform_indices = @transform_3, window_bounds = array<i64: 128, 128>}, {pipeline_mode = #tpu.pipeline_mode<synchronous>, transform_indices = @transform_4, window_bounds = array<i64: 1, 512>}, {transform_indices = @transform_5, window_bounds = array<i64: 8, 128>}]} {
    %c0 = arith.constant 0 : index
    %c0_0 = arith.constant 0 : index
    %0 = vector.load %arg1[%c0, %c0_0] : memref<8x256xbf16, #tpu.memory_space<vmem>>, vector<8x256xbf16>
    %c0_1 = arith.constant 0 : index
    %c0_2 = arith.constant 0 : index
    %1 = vector.load %arg2[%c0_1, %c0_2] : memref<256x256xbf16, #tpu.memory_space<vmem>>, vector<256x256xbf16>
    %cst = arith.constant dense<0.000000e+00> : vector<8x256xf32>
    %2 = tpu.matmul %0, %1, %cst {dimension_numbers = #tpu.dot_dimension_numbers<[1], [0], [0], [1], [0, 0, 1, 1], [], []>} : vector<8x256xbf16>, vector<256x256xbf16>, vector<8x256xf32> -> vector<8x256xf32>
    %c0_3 = arith.constant 0 : index
    %c0_4 = arith.constant 0 : index
    %3 = vector.load %arg5[%c0_3, %c0_4] : memref<1x512xf32, #tpu.memory_space<vmem>>, vector<1x256xf32>
    %4 = vector.broadcast %3 : vector<1x256xf32> to vector<8x256xf32>
    %5 = arith.addf %2, %4 : vector<8x256xf32>
    %cst_5 = arith.constant 0.000000e+00 : f32
    %6 = vector.broadcast %cst_5 : f32 to vector<8x256xf32>
    %7 = arith.maximumf %5, %6 : vector<8x256xf32>
    %8 = arith.truncf %7 : vector<8x256xf32> to vector<8x256xbf16>
    %c0_6 = arith.constant 0 : index
    %c0_7 = arith.constant 0 : index
    %9 = vector.load %arg3[%c0_6, %c0_7] : memref<256x128xbf16, #tpu.memory_space<vmem>>, vector<256x128xbf16>
    %cst_8 = arith.constant dense<0.000000e+00> : vector<8x128xf32>
    %10 = tpu.matmul %8, %9, %cst_8 {dimension_numbers = #tpu.dot_dimension_numbers<[1], [0], [0], [1], [0, 0, 1, 1], [], []>} : vector<8x256xbf16>, vector<256x128xbf16>, vector<8x128xf32> -> vector<8x128xf32>
    %c0_9 = arith.constant 0 : index
    %c256 = arith.constant 256 : index
    %11 = vector.load %arg5[%c0_9, %c256] : memref<1x512xf32, #tpu.memory_space<vmem>>, vector<1x128xf32>
    %12 = vector.broadcast %11 : vector<1x128xf32> to vector<8x128xf32>
    %13 = arith.addf %10, %12 : vector<8x128xf32>
    %cst_10 = arith.constant 0.000000e+00 : f32
    %14 = vector.broadcast %cst_10 : f32 to vector<8x128xf32>
    %15 = arith.maximumf %13, %14 : vector<8x128xf32>
    %16 = arith.truncf %15 : vector<8x128xf32> to vector<8x128xbf16>
    %c0_11 = arith.constant 0 : index
    %c0_12 = arith.constant 0 : index
    %17 = vector.load %arg4[%c0_11, %c0_12] : memref<128x128xbf16, #tpu.memory_space<vmem>>, vector<128x128xbf16>
    %cst_13 = arith.constant dense<0.000000e+00> : vector<8x128xf32>
    %18 = tpu.matmul %16, %17, %cst_13 {dimension_numbers = #tpu.dot_dimension_numbers<[1], [0], [0], [1], [0, 0, 1, 1], [], []>} : vector<8x128xbf16>, vector<128x128xbf16>, vector<8x128xf32> -> vector<8x128xf32>
    %c0_14 = arith.constant 0 : index
    %c384 = arith.constant 384 : index
    %19 = vector.load %arg5[%c0_14, %c384] : memref<1x512xf32, #tpu.memory_space<vmem>>, vector<1x128xf32>
    %20 = vector.broadcast %19 : vector<1x128xf32> to vector<8x128xf32>
    %21 = arith.addf %18, %20 : vector<8x128xf32>
    %22 = tpu.iota {dimensions = array<i32: 1>} : vector<8x128xi32>
    %c41_i32 = arith.constant 41 : i32
    %23 = vector.broadcast %c41_i32 : i32 to vector<8x128xi32>
    %24 = arith.cmpi eq, %22, %23 : vector<8x128xi32>
    %25 = math.tanh %21 : vector<8x128xf32>
    %26 = arith.select %24, %25, %21 : vector<8x128xi1>, vector<8x128xf32>
    %c0_15 = arith.constant 0 : index
    %c0_16 = arith.constant 0 : index
    %27 = vector.load %arg6[%c0_15, %c0_16] : memref<8x128xf32, #tpu.memory_space<vmem>>, vector<8x128xf32>
    tpu.vector_store %arg6[%c0_15, %c0_16], %26 {strides = array<i32>} : memref<8x128xf32, #tpu.memory_space<vmem>>, vector<8x128xf32>,
    return
  }
  func.func @transform_0(%arg0: i32) -> (i32, i32) {
    %c0_i32 = arith.constant 0 : i32
    %c0_i32_0 = arith.constant 0 : i32
    return %arg0, %c0_i32 : i32, i32
  }
  func.func @transform_1(%arg0: i32) -> (i32, i32) {
    %c0_i32 = arith.constant 0 : i32
    %c0_i32_0 = arith.constant 0 : i32
    %c0_i32_1 = arith.constant 0 : i32
    return %c0_i32, %c0_i32_0 : i32, i32
  }
  func.func @transform_2(%arg0: i32) -> (i32, i32) {
    %c0_i32 = arith.constant 0 : i32
    %c0_i32_0 = arith.constant 0 : i32
    %c0_i32_1 = arith.constant 0 : i32
    return %c0_i32, %c0_i32_0 : i32, i32
  }
  func.func @transform_3(%arg0: i32) -> (i32, i32) {
    %c0_i32 = arith.constant 0 : i32
    %c0_i32_0 = arith.constant 0 : i32
    %c0_i32_1 = arith.constant 0 : i32
    return %c0_i32, %c0_i32_0 : i32, i32
  }
  func.func @transform_4(%arg0: i32) -> (i32, i32) {
    %c0_i32 = arith.constant 0 : i32
    %c0_i32_0 = arith.constant 0 : i32
    %c0_i32_1 = arith.constant 0 : i32
    return %c0_i32, %c0_i32_0 : i32, i32
  }
  func.func @transform_5(%arg0: i32) -> (i32, i32) {
    %c0_i32 = arith.constant 0 : i32
    %c0_i32_0 = arith.constant 0 : i32
    return %arg0, %c0_i32 : i32, i32
  }
}

</mosaic_0001>

<llo_original>
// kernel: tpu_custom_call.1
$region0: #{tpu_custom_call.1}
  #allocation0 [shape = 'u32[]', space=smem, size = 0x4, offset = 0x4, fixed_abs, tag = 'smem constant byte address 0x4 - core index']
  #allocation1 [shape = 'u32[144,128]{1,0:T(1,128)}', space=vmem, size = 0x12000, scoped, tag = 'internal scratch']
  %s0 = inlined_call_operand.hbm [shape: bf16[8,256], index: 0, kind: input, shape index: {}]
  %s1 = inlined_call_operand.hbm [shape: bf16[256,256], index: 1, kind: input, shape index: {}]
  %s2 = inlined_call_operand.hbm [shape: bf16[256,128], index: 2, kind: input, shape index: {}]
  %s3 = inlined_call_operand.hbm [shape: bf16[128,128], index: 3, kind: input, shape index: {}]
  %s4 = inlined_call_operand.vmem [shape: f32[1,512], index: 4, kind: input, shape index: {}]
  %s5 = inlined_call_operand.hbm [shape: f32[8,128], index: 5, kind: output, shape index: {}]
  %s6 = sld [smem:[#allocation0]]
  $region46: #{tpu_custom_call.1} parent=0
    _
  %s8 = ssub.s32 1, %s6
  %s9 = scalar_select 0, %s8, %s6
  $region1: #{tpu_custom_call.1} parent=0
    #allocation2 [shape = 'u8[4096]{0}', space=vmem, size = 0x1000, scoped, tag = 'input window, operand 0, single buffered']
    #allocation3 [shape = 's32[1]{0}', space=sflag, size = 0x4, scoped, tag = 'scoped memory for tpu_custom_call.1']
    #allocation4 [shape = 's32[1]{0}', space=sflag, size = 0x4, scoped, tag = 'scoped memory for tpu_custom_call.1']
    #allocation5 [shape = 'u8[131072]{0}', space=vmem, size = 0x20000, scoped, tag = 'input window, operand 1, single buffered']
    #allocation6 [shape = 's32[1]{0}', space=sflag, size = 0x4, scoped, tag = 'scoped memory for tpu_custom_call.1']
    #allocation7 [shape = 'u8[65536]{0}', space=vmem, size = 0x10000, scoped, tag = 'input window, operand 2, single buffered']
    #allocation8 [shape = 'u8[32768]{0}', space=vmem, size = 0x8000, scoped, tag = 'input window, operand 3, single buffered']
    #allocation9 [shape = 's32[1]{0}', space=sflag, size = 0x4, scoped, tag = 'scoped memory for tpu_custom_call.1']
    #allocation10 [shape = 'u8[4096]{0}', space=vmem, size = 0x1000, scoped, tag = 'output window, operand 0, single buffered']
    %10 = vsyncpa [#allocation3], 0
    %11 = vsyncpa [#allocation6], 0
    %12 = vsyncpa [#allocation9], 0
    %13 = vsyncpa [#allocation4], 0
    // Predicated region
    $region2: #{tpu_custom_call.1} parent=1 // pred_check
      _
    $region3: #{tpu_custom_call.1} parent=1 // pred_check_branch
      %15 = sbr.rel (0) target = $region5
    $region4: #{tpu_custom_call.1} parent=1 // pred_region
      %s17 = ssub.s32 128, 128
      %18 = vsyncadd [#allocation3], %s17
      %s20 = sshll.u32 [#allocation2], 4
      %s21 = int_to_ptr.vmem [resolvable:$true] %s20
      %23 = dma.hbm_to_vmem [thread:$0]  %s0, 128, %s21, [#allocation3]
    $region5: #{tpu_custom_call.1} parent=1 // pred_fallthru
      _
    // Predicated region
    $region6: #{tpu_custom_call.1} parent=1 // pred_check
      _
    $region7: #{tpu_custom_call.1} parent=1 // pred_check_branch
      %25 = sbr.rel (0) target = $region9
    $region8: #{tpu_custom_call.1} parent=1 // pred_region
      %s27 = ssub.s32 4096, 4096
      %28 = vsyncadd [#allocation6], %s27
      %s29 = sshll.u32 [#allocation5], 4
      %s30 = int_to_ptr.vmem [resolvable:$true] %s29
      %35 = dma.hbm_to_vmem [thread:$0]  %s1, 4096, %s30, [#allocation6], 128, 128, 8
    $region9: #{tpu_custom_call.1} parent=1 // pred_fallthru
      _
    // Predicated region
    $region10: #{tpu_custom_call.1} parent=1 // pred_check
      _
    $region11: #{tpu_custom_call.1} parent=1 // pred_check_branch
      %37 = sbr.rel (0) target = $region13
    $region12: #{tpu_custom_call.1} parent=1 // pred_region
      %s39 = ssub.s32 2048, 2048
      %40 = vsyncadd [#allocation6], %s39
      %s41 = sshll.u32 [#allocation7], 4
      %s42 = int_to_ptr.vmem [resolvable:$true] %s41
      %47 = dma.hbm_to_vmem [thread:$0]  %s2, 2048, %s42, [#allocation6], 64, 64, 4
    $region13: #{tpu_custom_call.1} parent=1 // pred_fallthru
      _
    // Predicated region
    $region14: #{tpu_custom_call.1} parent=1 // pred_check
      _
    $region15: #{tpu_custom_call.1} parent=1 // pred_check_branch
      %49 = sbr.rel (0) target = $region17
    $region16: #{tpu_custom_call.1} parent=1 // pred_region
      %s51 = ssub.s32 1024, 1024
      %52 = vsyncadd [#allocation9], %s51
      %s53 = sshll.u32 [#allocation8], 4
      %s54 = int_to_ptr.vmem [resolvable:$true] %s53
      %59 = dma.hbm_to_vmem [thread:$0]  %s3, 1024, %s54, [#allocation9], 64, 64, 4
    $region17: #{tpu_custom_call.1} parent=1 // pred_fallthru
      _
    // Predicated region
    $region18: #{tpu_custom_call.1} parent=1 // pred_check
      _
    $region19: #{tpu_custom_call.1} parent=1 // pred_check_branch
      %61 = sbr.rel (0) target = $region21
    $region20: #{tpu_custom_call.1} parent=1 // pred_region
      _
    $region21: #{tpu_custom_call.1} parent=1 // pred_fallthru
      _
    // Predicated region
    $region22: #{tpu_custom_call.1} parent=1 // pred_check
      _
    $region23: #{tpu_custom_call.1} parent=1 // pred_check_branch
      %63 = sbr.rel (0) target = $region25
    $region24: #{tpu_custom_call.1} parent=1 // pred_region
      %64 = dma.done [#allocation3], 128
    $region25: #{tpu_custom_call.1} parent=1 // pred_fallthru
      _
    // Predicated region
    $region26: #{tpu_custom_call.1} parent=1 // pred_check
      _
    $region27: #{tpu_custom_call.1} parent=1 // pred_check_branch
      %66 = sbr.rel (0) target = $region29
    $region28: #{tpu_custom_call.1} parent=1 // pred_region
      %67 = dma.done [#allocation6], 4096
    $region29: #{tpu_custom_call.1} parent=1 // pred_fallthru
      _
    // Predicated region
    $region30: #{tpu_custom_call.1} parent=1 // pred_check
      _
    $region31: #{tpu_custom_call.1} parent=1 // pred_check_branch
      %69 = sbr.rel (0) target = $region33
    $region32: #{tpu_custom_call.1} parent=1 // pred_region
      %70 = dma.done [#allocation6], 2048
    $region33: #{tpu_custom_call.1} parent=1 // pred_fallthru
      _
    // Predicated region
    $region34: #{tpu_custom_call.1} parent=1 // pred_check
      _
    $region35: #{tpu_custom_call.1} parent=1 // pred_check_branch
      %72 = sbr.rel (0) target = $region37
    $region36: #{tpu_custom_call.1} parent=1 // pred_region
      %73 = dma.done [#allocation9], 1024
    $region37: #{tpu_custom_call.1} parent=1 // pred_fallthru
      _
    %v75 = vld [vmem:[#allocation2] sm:$0xff]
    %v76 = vld [vmem:[#allocation5] sm:$0xff]
    %v77 = vld [vmem:[#allocation5 + $0x8] sm:$0xff]
    %v78 = vld [vmem:[#allocation5 + $0x10] sm:$0xff]
    %v79 = vld [vmem:[#allocation5 + $0x18] sm:$0xff]
    %v80 = vld [vmem:[#allocation5 + $0x20] sm:$0xff]
    %v81 = vld [vmem:[#allocation5 + $0x28] sm:$0xff]
    %v82 = vld [vmem:[#allocation5 + $0x30] sm:$0xff]
    %v83 = vld [vmem:[#allocation5 + $0x38] sm:$0xff]
    %v84 = vld [vmem:[#allocation5 + $0x40] sm:$0xff]
    %v85 = vld [vmem:[#allocation5 + $0x48] sm:$0xff]
    %v86 = vld [vmem:[#allocation5 + $0x50] sm:$0xff]
    %v87 = vld [vmem:[#allocation5 + $0x58] sm:$0xff]
    %v88 = vld [vmem:[#allocation5 + $0x60] sm:$0xff]
    %v89 = vld [vmem:[#allocation5 + $0x68] sm:$0xff]
    %v90 = vld [vmem:[#allocation5 + $0x70] sm:$0xff]
    %v91 = vld [vmem:[#allocation5 + $0x78] sm:$0xff]
    %v92 = vld [vmem:[#allocation5 + $0x80] sm:$0xff]
    %v93 = vld [vmem:[#allocation5 + $0x88] sm:$0xff]
    %v94 = vld [vmem:[#allocation5 + $0x90] sm:$0xff]
    %v95 = vld [vmem:[#allocation5 + $0x98] sm:$0xff]
    %v96 = vld [vmem:[#allocation5 + $0xa0] sm:$0xff]
    %v97 = vld [vmem:[#allocation5 + $0xa8] sm:$0xff]
    %v98 = vld [vmem:[#allocation5 + $0xb0] sm:$0xff]
    %v99 = vld [vmem:[#allocation5 + $0xb8] sm:$0xff]
    %v100 = vld [vmem:[#allocation5 + $0xc0] sm:$0xff]
    %v101 = vld [vmem:[#allocation5 + $0xc8] sm:$0xff]
    %v102 = vld [vmem:[#allocation5 + $0xd0] sm:$0xff]
    %v103 = vld [vmem:[#allocation5 + $0xd8] sm:$0xff]
    %v104 = vld [vmem:[#allocation5 + $0xe0] sm:$0xff]
    %v105 = vld [vmem:[#allocation5 + $0xe8] sm:$0xff]
    %v106 = vld [vmem:[#allocation5 + $0xf0] sm:$0xff]
    %v107 = vld [vmem:[#allocation5 + $0xf8] sm:$0xff]
    %v108 = vld [vmem:[%s4] sm:$0x3]
    %v110 = vlaneseq
    %v111 = vshrl.u32 %v110, 7
    %v112 = vsub.s32 0, %v111
    %v113 = vrot.slane %v108, %v112
    %v114 = vlaneseq
    %v115 = vshrl.u32 %v114, 7
    %v116 = vsub.s32 1, %v115
    %v117 = vrot.slane %v108, %v116
    %v121 = vunpack.c.l.b16 %v75
    %v122 = vunpack.c.h.b16 %v75
    %v123 = vpack.c.b16 %v121, %v121
    %v124 = vpack.c.b16 %v122, %v122
    %v159 = vunpack.c.l.b16 %v76
    %v160 = vunpack.c.h.b16 %v76
    %v161 = vunpack.c.l.b16 %v77
    %v162 = vunpack.c.h.b16 %v77
    %v163 = vunpack.c.l.b16 %v78
    %v164 = vunpack.c.h.b16 %v78
    %v165 = vunpack.c.l.b16 %v79
    %v166 = vunpack.c.h.b16 %v79
    %v167 = vunpack.c.l.b16 %v80
    %v168 = vunpack.c.h.b16 %v80
    %v169 = vunpack.c.l.b16 %v81
    %v170 = vunpack.c.h.b16 %v81
    %v171 = vunpack.c.l.b16 %v82
    %v172 = vunpack.c.h.b16 %v82
    %v173 = vunpack.c.l.b16 %v83
    %v174 = vunpack.c.h.b16 %v83
    %v175 = vunpack.c.l.b16 %v84
    %v176 = vunpack.c.h.b16 %v84
    %v177 = vunpack.c.l.b16 %v85
    %v178 = vunpack.c.h.b16 %v85
    %v179 = vunpack.c.l.b16 %v86
    %v180 = vunpack.c.h.b16 %v86
    %v181 = vunpack.c.l.b16 %v87
    %v182 = vunpack.c.h.b16 %v87
    %v183 = vunpack.c.l.b16 %v88
    %v184 = vunpack.c.h.b16 %v88
    %v185 = vunpack.c.l.b16 %v89
    %v186 = vunpack.c.h.b16 %v89
    %v187 = vunpack.c.l.b16 %v90
    %v188 = vunpack.c.h.b16 %v90
    %v189 = vunpack.c.l.b16 %v91
    %v190 = vunpack.c.h.b16 %v91
    %v191 = vunpack.c.l.b16 %v92
    %v192 = vunpack.c.h.b16 %v92
    %v193 = vunpack.c.l.b16 %v93
    %v194 = vunpack.c.h.b16 %v93
    %v195 = vunpack.c.l.b16 %v94
    %v196 = vunpack.c.h.b16 %v94
    %v197 = vunpack.c.l.b16 %v95
    %v198 = vunpack.c.h.b16 %v95
    %v199 = vunpack.c.l.b16 %v96
    %v200 = vunpack.c.h.b16 %v96
    %v201 = vunpack.c.l.b16 %v97
    %v202 = vunpack.c.h.b16 %v97
    %v203 = vunpack.c.l.b16 %v98
    %v204 = vunpack.c.h.b16 %v98
    %v205 = vunpack.c.l.b16 %v99
    %v206 = vunpack.c.h.b16 %v99
    %v207 = vunpack.c.l.b16 %v100
    %v208 = vunpack.c.h.b16 %v100
    %v209 = vunpack.c.l.b16 %v101
    %v210 = vunpack.c.h.b16 %v101
    %v211 = vunpack.c.l.b16 %v102
    %v212 = vunpack.c.h.b16 %v102
    %v213 = vunpack.c.l.b16 %v103
    %v214 = vunpack.c.h.b16 %v103
    %v215 = vunpack.c.l.b16 %v104
    %v216 = vunpack.c.h.b16 %v104
    %v217 = vunpack.c.l.b16 %v105
    %v218 = vunpack.c.h.b16 %v105
    %v219 = vunpack.c.l.b16 %v106
    %v220 = vunpack.c.h.b16 %v106
    %v221 = vunpack.c.l.b16 %v107
    %v222 = vunpack.c.h.b16 %v107
    %v223 = vpack.c.b16 %v161, %v159
    %v224 = vpack.c.b16 %v162, %v160
    %v225 = vpack.c.b16 %v165, %v163
    %v226 = vpack.c.b16 %v166, %v164
    %v227 = vpack.c.b16 %v169, %v167
    %v228 = vpack.c.b16 %v170, %v168
    %v229 = vpack.c.b16 %v173, %v171
    %v230 = vpack.c.b16 %v174, %v172
    %v231 = vpack.c.b16 %v177, %v175
    %v232 = vpack.c.b16 %v178, %v176
    %v233 = vpack.c.b16 %v181, %v179
    %v234 = vpack.c.b16 %v182, %v180
    %v235 = vpack.c.b16 %v185, %v183
    %v236 = vpack.c.b16 %v186, %v184
    %v237 = vpack.c.b16 %v189, %v187
    %v238 = vpack.c.b16 %v190, %v188
    %v239 = vpack.c.b16 %v193, %v191
    %v240 = vpack.c.b16 %v194, %v192
    %v241 = vpack.c.b16 %v197, %v195
    %v242 = vpack.c.b16 %v198, %v196
    %v243 = vpack.c.b16 %v201, %v199
    %v244 = vpack.c.b16 %v202, %v200
    %v245 = vpack.c.b16 %v205, %v203
    %v246 = vpack.c.b16 %v206, %v204
    %v247 = vpack.c.b16 %v209, %v207
    %v248 = vpack.c.b16 %v210, %v208
    %v249 = vpack.c.b16 %v213, %v211
    %v250 = vpack.c.b16 %v214, %v212
    %v251 = vpack.c.b16 %v217, %v215
    %v252 = vpack.c.b16 %v218, %v216
    %v253 = vpack.c.b16 %v221, %v219
    %v254 = vpack.c.b16 %v222, %v220
    %287 = vmatprep.subr.bf16.mxu0 %v224
    %288 = vmatpush1.bf16.msra.mxu0 %v223
    %289 = vmatprep.subr.bf16.mxu0 %v226
    %290 = vmatpush1.bf16.msra.mxu0 %v225
    %291 = vmatprep.subr.bf16.mxu0 %v228
    %292 = vmatpush1.bf16.msra.mxu0 %v227
    %293 = vmatprep.subr.bf16.mxu0 %v230
    %294 = vmatpush1.bf16.msra.mxu0 %v229
    %295 = vmatprep.subr.bf16.mxu0 %v232
    %296 = vmatpush1.bf16.msra.mxu0 %v231
    %297 = vmatprep.subr.bf16.mxu0 %v234
    %298 = vmatpush1.bf16.msra.mxu0 %v233
    %299 = vmatprep.subr.bf16.mxu0 %v236
    %300 = vmatpush1.bf16.msra.mxu0 %v235
    %301 = vmatprep.subr.bf16.mxu0 %v238
    %302 = vmatpush1.bf16.msra.mxu0 %v237
    %303 = vmatprep.subr.bf16.mxu0 %v240
    %304 = vmatpush1.bf16.msra.mxu0 %v239
    %305 = vmatprep.subr.bf16.mxu0 %v242
    %306 = vmatpush1.bf16.msra.mxu0 %v241
    %307 = vmatprep.subr.bf16.mxu0 %v244
    %308 = vmatpush1.bf16.msra.mxu0 %v243
    %309 = vmatprep.subr.bf16.mxu0 %v246
    %310 = vmatpush1.bf16.msra.mxu0 %v245
    %311 = vmatprep.subr.bf16.mxu0 %v248
    %312 = vmatpush1.bf16.msra.mxu0 %v247
    %313 = vmatprep.subr.bf16.mxu0 %v250
    %314 = vmatpush1.bf16.msra.mxu0 %v249
    %315 = vmatprep.subr.bf16.mxu0 %v252
    %316 = vmatpush1.bf16.msra.mxu0 %v251
    %317 = vmatprep.subr.bf16.mxu0 %v254
    %318 = vmatpush1.bf16.msra.mxu0 %v253
    %319 = vmatprep.mubr.bf16.mxu0 %v124
    %320 = vmatmul.mubr.bf16.gmra.mrb[0].mxu0 %v123
    %v321 = vpop.f32.mrb[0].mxu0
    %v322 = vadd.f32 %v113, %v321
    %v323 = vpop.f32.mrb[0].mxu0
    %v324 = vadd.f32 %v117, %v323
    %v325 = vpop.f32.mrb[0].mxu0
    %v326 = vpop.f32.mrb[0].mxu0
    %327 = vdwg.mxu0
    %v328 = vmax.f32 %v322, 0.0
    %v329 = vmax.f32 %v324, 0.0
    %v330 = vpack.c.bf16 %v328, %v328
    %v331 = vpack.c.bf16 %v329, %v329
    %v332 = vld [vmem:[#allocation7] sm:$0xf]
    %v333 = vld [vmem:[#allocation7 + $0x4] sm:$0xf]
    %v334 = vld [vmem:[#allocation7 + $0x8] sm:$0xf]
    %v335 = vld [vmem:[#allocation7 + $0xc] sm:$0xf]
    %v336 = vld [vmem:[#allocation7 + $0x10] sm:$0xf]
    %v337 = vld [vmem:[#allocation7 + $0x14] sm:$0xf]
    %v338 = vld [vmem:[#allocation7 + $0x18] sm:$0xf]
    %v339 = vld [vmem:[#allocation7 + $0x1c] sm:$0xf]
    %v340 = vld [vmem:[#allocation7 + $0x20] sm:$0xf]
    %v341 = vld [vmem:[#allocation7 + $0x24] sm:$0xf]
    %v342 = vld [vmem:[#allocation7 + $0x28] sm:$0xf]
    %v343 = vld [vmem:[#allocation7 + $0x2c] sm:$0xf]
    %v344 = vld [vmem:[#allocation7 + $0x30] sm:$0xf]
    %v345 = vld [vmem:[#allocation7 + $0x34] sm:$0xf]
    %v346 = vld [vmem:[#allocation7 + $0x38] sm:$0xf]
    %v347 = vld [vmem:[#allocation7 + $0x3c] sm:$0xf]
    %v348 = vld [vmem:[#allocation7 + $0x40] sm:$0xf]
    %v349 = vld [vmem:[#allocation7 + $0x44] sm:$0xf]
    %v350 = vld [vmem:[#allocation7 + $0x48] sm:$0xf]
    %v351 = vld [vmem:[#allocation7 + $0x4c] sm:$0xf]
    %v352 = vld [vmem:[#allocation7 + $0x50] sm:$0xf]
    %v353 = vld [vmem:[#allocation7 + $0x54] sm:$0xf]
    %v354 = vld [vmem:[#allocation7 + $0x58] sm:$0xf]
    %v355 = vld [vmem:[#allocation7 + $0x5c] sm:$0xf]
    %v356 = vld [vmem:[#allocation7 + $0x60] sm:$0xf]
    %v357 = vld [vmem:[#allocation7 + $0x64] sm:$0xf]
    %v358 = vld [vmem:[#allocation7 + $0x68] sm:$0xf]
    %v359 = vld [vmem:[#allocation7 + $0x6c] sm:$0xf]
    %v360 = vld [vmem:[#allocation7 + $0x70] sm:$0xf]
    %v361 = vld [vmem:[#allocation7 + $0x74] sm:$0xf]
    %v362 = vld [vmem:[#allocation7 + $0x78] sm:$0xf]
    %v363 = vld [vmem:[#allocation7 + $0x7c] sm:$0xf]
    %v364 = vld [vmem:[%s4 + $0x2] sm:$0x1]
    %v366 = vlaneseq
    %v367 = vshrl.u32 %v366, 7
    %v368 = vsub.s32 0, %v367
    %v369 = vrot.slane %v364, %v368
    %v403 = vunpack.c.l.b16 %v332
    %v404 = vunpack.c.l.b16 %v333
    %v405 = vunpack.c.l.b16 %v334
    %v406 = vunpack.c.l.b16 %v335
    %v407 = vunpack.c.l.b16 %v336
    %v408 = vunpack.c.l.b16 %v337
    %v409 = vunpack.c.l.b16 %v338
    %v410 = vunpack.c.l.b16 %v339
    %v411 = vunpack.c.l.b16 %v340
    %v412 = vunpack.c.l.b16 %v341
    %v413 = vunpack.c.l.b16 %v342
    %v414 = vunpack.c.l.b16 %v343
    %v415 = vunpack.c.l.b16 %v344
    %v416 = vunpack.c.l.b16 %v345
    %v417 = vunpack.c.l.b16 %v346
    %v418 = vunpack.c.l.b16 %v347
    %v419 = vunpack.c.l.b16 %v348
    %v420 = vunpack.c.l.b16 %v349
    %v421 = vunpack.c.l.b16 %v350
    %v422 = vunpack.c.l.b16 %v351
    %v423 = vunpack.c.l.b16 %v352
    %v424 = vunpack.c.l.b16 %v353
    %v425 = vunpack.c.l.b16 %v354
    %v426 = vunpack.c.l.b16 %v355
    %v427 = vunpack.c.l.b16 %v356
    %v428 = vunpack.c.l.b16 %v357
    %v429 = vunpack.c.l.b16 %v358
    %v430 = vunpack.c.l.b16 %v359
    %v431 = vunpack.c.l.b16 %v360
    %v432 = vunpack.c.l.b16 %v361
    %v433 = vunpack.c.l.b16 %v362
    %v434 = vunpack.c.l.b16 %v363
    %v435 = vpack.c.b16 %v404, %v403
    %v436 = vpack.c.b16 %v406, %v405
    %v437 = vpack.c.b16 %v408, %v407
    %v438 = vpack.c.b16 %v410, %v409
    %v439 = vpack.c.b16 %v412, %v411
    %v440 = vpack.c.b16 %v414, %v413
    %v441 = vpack.c.b16 %v416, %v415
    %v442 = vpack.c.b16 %v418, %v417
    %v443 = vpack.c.b16 %v420, %v419
    %v444 = vpack.c.b16 %v422, %v421
    %v445 = vpack.c.b16 %v424, %v423
    %v446 = vpack.c.b16 %v426, %v425
    %v447 = vpack.c.b16 %v428, %v427
    %v448 = vpack.c.b16 %v430, %v429
    %v449 = vpack.c.b16 %v432, %v431
    %v450 = vpack.c.b16 %v434, %v433
    %467 = vmatprep.subr.bf16.mxu0 0
    %468 = vmatpush1.bf16.msra.mxu0 %v435
    %469 = vmatprep.subr.bf16.mxu0 0
    %470 = vmatpush1.bf16.msra.mxu0 %v436
    %471 = vmatprep.subr.bf16.mxu0 0
    %472 = vmatpush1.bf16.msra.mxu0 %v437
    %473 = vmatprep.subr.bf16.mxu0 0
    %474 = vmatpush1.bf16.msra.mxu0 %v438
    %475 = vmatprep.subr.bf16.mxu0 0
    %476 = vmatpush1.bf16.msra.mxu0 %v439
    %477 = vmatprep.subr.bf16.mxu0 0
    %478 = vmatpush1.bf16.msra.mxu0 %v440
    %479 = vmatprep.subr.bf16.mxu0 0
    %480 = vmatpush1.bf16.msra.mxu0 %v441
    %481 = vmatprep.subr.bf16.mxu0 0
    %482 = vmatpush1.bf16.msra.mxu0 %v442
    %483 = vmatprep.subr.bf16.mxu0 0
    %484 = vmatpush1.bf16.msra.mxu0 %v443
    %485 = vmatprep.subr.bf16.mxu0 0
    %486 = vmatpush1.bf16.msra.mxu0 %v444
    %487 = vmatprep.subr.bf16.mxu0 0
    %488 = vmatpush1.bf16.msra.mxu0 %v445
    %489 = vmatprep.subr.bf16.mxu0 0
    %490 = vmatpush1.bf16.msra.mxu0 %v446
    %491 = vmatprep.subr.bf16.mxu0 0
    %492 = vmatpush1.bf16.msra.mxu0 %v447
    %493 = vmatprep.subr.bf16.mxu0 0
    %494 = vmatpush1.bf16.msra.mxu0 %v448
    %495 = vmatprep.subr.bf16.mxu0 0
    %496 = vmatpush1.bf16.msra.mxu0 %v449
    %497 = vmatprep.subr.bf16.mxu0 0
    %498 = vmatpush1.bf16.msra.mxu0 %v450
    %499 = vmatprep.mubr.bf16.mxu0 %v331
    %500 = vmatmul.mubr.bf16.gmra.mrb[0].mxu0 %v330
    %v501 = vpop.f32.mrb[0].mxu0
    %v502 = vadd.f32 %v369, %v501
    %v503 = vpop.f32.mrb[0].mxu0
    %v504 = vpop.f32.mrb[0].mxu0
    %v505 = vpop.f32.mrb[0].mxu0
    %506 = vdwg.mxu0
    %v507 = vmax.f32 %v502, 0.0
    %v508 = vpack.c.bf16 %v507, %v507
    %v509 = vld [vmem:[#allocation8] sm:$0xf]
    %v510 = vld [vmem:[#allocation8 + $0x4] sm:$0xf]
    %v511 = vld [vmem:[#allocation8 + $0x8] sm:$0xf]
    %v512 = vld [vmem:[#allocation8 + $0xc] sm:$0xf]
    %v513 = vld [vmem:[#allocation8 + $0x10] sm:$0xf]
    %v514 = vld [vmem:[#allocation8 + $0x14] sm:$0xf]
    %v515 = vld [vmem:[#allocation8 + $0x18] sm:$0xf]
    %v516 = vld [vmem:[#allocation8 + $0x1c] sm:$0xf]
    %v517 = vld [vmem:[#allocation8 + $0x20] sm:$0xf]
    %v518 = vld [vmem:[#allocation8 + $0x24] sm:$0xf]
    %v519 = vld [vmem:[#allocation8 + $0x28] sm:$0xf]
    %v520 = vld [vmem:[#allocation8 + $0x2c] sm:$0xf]
    %v521 = vld [vmem:[#allocation8 + $0x30] sm:$0xf]
    %v522 = vld [vmem:[#allocation8 + $0x34] sm:$0xf]
    %v523 = vld [vmem:[#allocation8 + $0x38] sm:$0xf]
    %v524 = vld [vmem:[#allocation8 + $0x3c] sm:$0xf]
    %v525 = vld [vmem:[%s4 + $0x3] sm:$0x1]
    %v527 = vlaneseq
    %v528 = vshrl.u32 %v527, 7
    %v529 = vsub.s32 0, %v528
    %v530 = vrot.slane %v525, %v529
    %v548 = vunpack.c.l.b16 %v509
    %v549 = vunpack.c.l.b16 %v510
    %v550 = vunpack.c.l.b16 %v511
    %v551 = vunpack.c.l.b16 %v512
    %v552 = vunpack.c.l.b16 %v513
    %v553 = vunpack.c.l.b16 %v514
    %v554 = vunpack.c.l.b16 %v515
    %v555 = vunpack.c.l.b16 %v516
    %v556 = vunpack.c.l.b16 %v517
    %v557 = vunpack.c.l.b16 %v518
    %v558 = vunpack.c.l.b16 %v519
    %v559 = vunpack.c.l.b16 %v520
    %v560 = vunpack.c.l.b16 %v521
    %v561 = vunpack.c.l.b16 %v522
    %v562 = vunpack.c.l.b16 %v523
    %v563 = vunpack.c.l.b16 %v524
    %v564 = vpack.c.b16 %v549, %v548
    %v565 = vpack.c.b16 %v551, %v550
    %v566 = vpack.c.b16 %v553, %v552
    %v567 = vpack.c.b16 %v555, %v554
    %v568 = vpack.c.b16 %v557, %v556
    %v569 = vpack.c.b16 %v559, %v558
    %v570 = vpack.c.b16 %v561, %v560
    %v571 = vpack.c.b16 %v563, %v562
    %580 = vmatprep.subr.bf16.mxu0 0
    %581 = vmatpush1.bf16.msra.mxu0 %v564
    %582 = vmatprep.subr.bf16.mxu0 0
    %583 = vmatpush1.bf16.msra.mxu0 %v565
    %584 = vmatprep.subr.bf16.mxu0 0
    %585 = vmatpush1.bf16.msra.mxu0 %v566
    %586 = vmatprep.subr.bf16.mxu0 0
    %587 = vmatpush1.bf16.msra.mxu0 %v567
    %588 = vmatprep.subr.bf16.mxu0 0
    %589 = vmatpush1.bf16.msra.mxu0 %v568
    %590 = vmatprep.subr.bf16.mxu0 0
    %591 = vmatpush1.bf16.msra.mxu0 %v569
    %592 = vmatprep.subr.bf16.mxu0 0
    %593 = vmatpush1.bf16.msra.mxu0 %v570
    %594 = vmatprep.subr.bf16.mxu0 0
    %595 = vmatpush1.bf16.msra.mxu0 %v571
    %596 = vmatprep.subr.bf16.mxu0 0
    %597 = vmatpush1.bf16.msra.mxu0 0
    %598 = vmatprep.subr.bf16.mxu0 0
    %599 = vmatpush1.bf16.msra.mxu0 0
    %600 = vmatprep.subr.bf16.mxu0 0
    %601 = vmatpush1.bf16.msra.mxu0 0
    %602 = vmatprep.subr.bf16.mxu0 0
    %603 = vmatpush1.bf16.msra.mxu0 0
    %604 = vmatprep.subr.bf16.mxu0 0
    %605 = vmatpush1.bf16.msra.mxu0 0
    %606 = vmatprep.subr.bf16.mxu0 0
    %607 = vmatpush1.bf16.msra.mxu0 0
    %608 = vmatprep.subr.bf16.mxu0 0
    %609 = vmatpush1.bf16.msra.mxu0 0
    %610 = vmatprep.subr.bf16.mxu0 0
    %611 = vmatpush1.bf16.msra.mxu0 0
    %612 = vmatprep.mubr.bf16.mxu0 0
    %613 = vmatmul.mubr.bf16.gmra.mrb[0].mxu0 %v508
    %v614 = vpop.f32.mrb[0].mxu0
    %v615 = vadd.f32 %v530, %v614
    %v616 = vpop.f32.mrb[0].mxu0
    %v617 = vpop.f32.mrb[0].mxu0
    %v618 = vpop.f32.mrb[0].mxu0
    %619 = vdwg.mxu0
    %v620 = vlaneseq
    %v621 = vand.u32 %v620, 127
    %vm622 = vcmp.eq.s32.totalorder %v621, 41
    %v623 = vtanh.pop %v615
    %v624 = vsel %vm622, %v623, %v615
    %625 = vst [vmem:[#allocation10] sm:$0xff] %v624
    // Predicated region
    $region38: #{tpu_custom_call.1} parent=1 // pred_check
      _
    $region39: #{tpu_custom_call.1} parent=1 // pred_check_branch
      %627 = sbr.rel (0) target = $region41
    $region40: #{tpu_custom_call.1} parent=1 // pred_region
      %s629 = ssub.s32 128, 128
      %630 = vsyncadd [#allocation4], %s629
      %s632 = sshll.u32 [#allocation10], 4
      %s633 = int_to_ptr.vmem [resolvable:$true] %s632
      %635 = dma.vmem_to_hbm [thread:$0]  %s633, 128, %s5, [#allocation4]
    $region41: #{tpu_custom_call.1} parent=1 // pred_fallthru
      _
    // Predicated region
    $region42: #{tpu_custom_call.1} parent=1 // pred_check
      _
    $region43: #{tpu_custom_call.1} parent=1 // pred_check_branch
      %637 = sbr.rel (0) target = $region45
    $region44: #{tpu_custom_call.1} parent=1 // pred_region
      %638 = dma.done [#allocation4], 128
    $region45: #{tpu_custom_call.1} parent=1 // pred_fallthru
      _
    %639 = vsyncpa [#allocation3], 1
    %640 = vsyncpa [#allocation6], 1
    %641 = vsyncpa [#allocation9], 1
    %642 = vsyncpa [#allocation4], 1

</llo_original>
